<compile_context>
chip_gen: v5e
topology: v5e:2x2
jax: 0.10.0
libtpu: 0.0.40
codegen_flags: <defaults>
</compile_context>

<pallas_src>
import jax
import jax.numpy as jnp
from jax.experimental import pallas as pl
from jax.experimental.pallas import tpu as pltpu

D_in = 2
D_out = 1
H1 = 5
H2 = 8

_LANE = 128

# Flat parameter packing (row-major), 68 f32 scalars total.
_OFF_W1 = 0                       # (H1, D_in)
_OFF_B1 = _OFF_W1 + H1 * D_in     # scalar
_OFF_W2 = _OFF_B1 + 1             # (H2, H1)
_OFF_B2 = _OFF_W2 + H2 * H1       # (H2,)
_OFF_W3 = _OFF_B2 + H2            # (D_out, H2) == (H2,)
_OFF_B3 = _OFF_W3 + D_out * H2    # scalar
_N_PARAMS = _OFF_B3 + 1           # 68


def _sigmoid(x):
    # exp(-x) on the EUP; approximate reciprocal also on the EUP (free slot),
    # keeping the VALU slots for the broadcast FMAs.
    return pl.reciprocal(1.0 + jnp.exp(-x), approx=True)


def _mlp_kernel(params_ref, x_ref, o_ref):
    # params_ref: (68,) f32 in SMEM (scalar-prefetched)
    # x_ref     : (D_in, TILE_R, 128) lane-dense activations in VMEM
    # o_ref     : (TILE_R, 128) lane-dense output in VMEM
    x0 = x_ref[0]                                    # (TILE_R, 128)
    x1 = x_ref[1]

    # layer 1: masked linear + shared scalar bias -> sigmoid
    b1 = params_ref[_OFF_B1]
    h1 = []
    for j in range(H1):
        pre = (x0 * params_ref[_OFF_W1 + j * D_in + 0]
               + x1 * params_ref[_OFF_W1 + j * D_in + 1]
               + b1)
        h1.append(_sigmoid(pre))

    # layer 2: Linear(H1 -> H2) -> sigmoid
    h2 = []
    for k in range(H2):
        pre = params_ref[_OFF_B2 + k]
        for j in range(H1):
            pre = pre + h1[j] * params_ref[_OFF_W2 + k * H1 + j]
        h2.append(_sigmoid(pre))

    # layer 3: Linear(H2 -> 1) -> relu
    pre = params_ref[_OFF_B3]
    for k in range(H2):
        pre = pre + h2[k] * params_ref[_OFF_W3 + k]
    o_ref[...] = jnp.maximum(pre, 0.0).astype(o_ref.dtype)


def pack_params(params):
    """Pack torch-layout parameters into one flat f32 vector for SMEM."""
    return jnp.concatenate([
        params["w1"].reshape(-1),
        params["b1"].reshape(-1),
        params["w2"].reshape(-1),
        params["b2"].reshape(-1),
        params["w3"].reshape(-1),
        params["b3"].reshape(-1),
    ]).astype(jnp.float32)


def paper_divider_forward(x, params, *, max_tile_rows=512):
    """x: (N, D_in) float array. params: dict with torch-layout weights."""
    N = x.shape[0]
    flat_params = pack_params(params)

    # Lane-dense layout: N -> (rows of 128 lanes). Tile rows in multiples of 8.
    r_needed = -(-N // _LANE)
    tile_r = min(max_tile_rows, ((r_needed + 7) // 8) * 8)
    r_pad = ((r_needed + tile_r - 1) // tile_r) * tile_r
    n_pad = r_pad * _LANE

    xp = jnp.zeros((n_pad, D_in), jnp.float32).at[:N].set(x.astype(jnp.float32))
    x_planes = xp.T.reshape(D_in, r_pad, _LANE)        # (2, r_pad, 128)

    grid = (r_pad // tile_r,)
    out = pl.pallas_call(
        _mlp_kernel,
        out_shape=jax.ShapeDtypeStruct((r_pad, _LANE), jnp.float32),
        grid_spec=pltpu.PrefetchScalarGridSpec(
            num_scalar_prefetch=1,
            grid=grid,
            in_specs=[
                pl.BlockSpec((D_in, tile_r, _LANE), lambda i, p: (0, i, 0)),
            ],
            out_specs=pl.BlockSpec((tile_r, _LANE), lambda i, p: (i, 0)),
        ),
        compiler_params=pltpu.CompilerParams(
            dimension_semantics=("parallel",)),
    )(flat_params, x_planes)

    return out.reshape(n_pad)[:N].reshape(N, D_out)


def init_params(key):
    """Deterministic synthetic init mirroring the torch module's __init__."""
    k1, kb, k2w, k2b, k3w, k3b = jax.random.split(key, 6)

    # self.linear1 = Parameter(torch.rand((H1, D_in))) with selected zeros
    w1 = jax.random.uniform(k1, (H1, D_in), dtype=jnp.float32)
    w1 = w1.at[0, 1].set(0.0)
    w1 = w1.at[1, 1].set(0.0)
    w1 = w1.at[2, 1].set(0.0)
    w1 = w1.at[3, 0].set(0.0)
    w1 = w1.at[4, 0].set(0.0)
    # self.bias = Parameter(torch.rand((1, 1)))
    b1 = jax.random.uniform(kb, (1, 1), dtype=jnp.float32)

    # lin2: Linear(H1, H2)
    bound2 = 1.0 / jnp.sqrt(jnp.float32(H1))
    w2 = jax.random.uniform(k2w, (H2, H1), jnp.float32, -bound2, bound2)
    b2 = jax.random.uniform(k2b, (H2,), jnp.float32, -bound2, bound2)

    # lin3: Linear(H2, D_out)
    bound3 = 1.0 / jnp.sqrt(jnp.float32(H2))
    w3 = jax.random.uniform(k3w, (D_out, H2), jnp.float32, -bound3, bound3)
    b3 = jax.random.uniform(k3b, (D_out,), jnp.float32, -bound3, bound3)

    return {"w1": w1, "b1": b1, "w2": w2, "b2": b2, "w3": w3, "b3": b3}


def reference_forward(x, params):
    h1 = jax.nn.sigmoid(x @ params["w1"].T + params["b1"])
    h2 = jax.nn.sigmoid(h1 @ params["w2"].T + params["b2"])
    h3 = h2 @ params["w3"].T + params["b3"]
    return jnp.maximum(h3, 0.0)


if __name__ == "__main__":
    key = jax.random.PRNGKey(0)
    kx, kp = jax.random.split(key)

    N = 1000  # deliberately not a multiple of 128 to exercise padding path
    x = jax.random.normal(kx, (N, D_in), dtype=jnp.float32)
    params = init_params(kp)

    out = paper_divider_forward(x, params)
    out = jax.block_until_ready(out)

    ref = reference_forward(x, params)
    assert out.shape == (N, D_out), out.shape
    # approx-reciprocal sigmoid introduces ~1e-4 abs error through the net.
    assert jnp.allclose(out, ref, atol=2e-3, rtol=2e-3), (
        jnp.max(jnp.abs(out - ref)))

    print("KERNEL_OK")
</pallas_src>

<mosaic_0001>
module attributes {stable_mosaic.version = 11 : i64} {
  func.func @_mlp_kernel(%arg0: i32, %arg1: memref<68xf32, #tpu.memory_space<smem>>, %arg2: memref<2x8x128xf32, #tpu.memory_space<vmem>>, %arg3: memref<8x128xf32, #tpu.memory_space<vmem>>) attributes {dimension_semantics = [#tpu.dimension_semantics<parallel>], iteration_bounds = array<i64: 1>, scalar_prefetch = 1 : i64, scratch_operands = 0 : i64, tpu.core_type = #tpu.core_type<tc>, window_params = [{transform_indices = @transform_0, window_bounds = array<i64: 2, 8, 128>}, {transform_indices = @transform_1, window_bounds = array<i64: 8, 128>}]} {
    %c0 = arith.constant 0 : index
    %c0_0 = arith.constant 0 : index
    %c0_1 = arith.constant 0 : index
    %0 = vector.load %arg2[%c0, %c0_0, %c0_1] : memref<2x8x128xf32, #tpu.memory_space<vmem>>, vector<1x8x128xf32>
    %1 = vector.shape_cast %0 : vector<1x8x128xf32> to vector<8x128xf32>
    %c1 = arith.constant 1 : index
    %c0_2 = arith.constant 0 : index
    %c0_3 = arith.constant 0 : index
    %2 = vector.load %arg2[%c1, %c0_2, %c0_3] : memref<2x8x128xf32, #tpu.memory_space<vmem>>, vector<1x8x128xf32>
    %3 = vector.shape_cast %2 : vector<1x8x128xf32> to vector<8x128xf32>
    %c10 = arith.constant 10 : index
    %4 = memref.load %arg1[%c10] : memref<68xf32, #tpu.memory_space<smem>>
    %c0_4 = arith.constant 0 : index
    %5 = memref.load %arg1[%c0_4] : memref<68xf32, #tpu.memory_space<smem>>
    %6 = vector.broadcast %5 : f32 to vector<8x128xf32>
    %7 = arith.mulf %1, %6 : vector<8x128xf32>
    %c1_5 = arith.constant 1 : index
    %8 = memref.load %arg1[%c1_5] : memref<68xf32, #tpu.memory_space<smem>>
    %9 = vector.broadcast %8 : f32 to vector<8x128xf32>
    %10 = arith.mulf %3, %9 : vector<8x128xf32>
    %11 = arith.addf %7, %10 : vector<8x128xf32>
    %12 = vector.broadcast %4 : f32 to vector<8x128xf32>
    %13 = arith.addf %11, %12 : vector<8x128xf32>
    %cst = arith.constant 0.000000e+00 : f32
    %14 = vector.broadcast %cst : f32 to vector<8x128xf32>
    %15 = arith.subf %14, %13 : vector<8x128xf32>
    %16 = math.exp %15 : vector<8x128xf32>
    %cst_6 = arith.constant 1.000000e+00 : f32
    %17 = vector.broadcast %cst_6 : f32 to vector<8x128xf32>
    %18 = arith.addf %17, %16 : vector<8x128xf32>
    %19 = tpu.reciprocal %18 {approx = true} : vector<8x128xf32> -> vector<8x128xf32>
    %c2 = arith.constant 2 : index
    %20 = memref.load %arg1[%c2] : memref<68xf32, #tpu.memory_space<smem>>
    %21 = vector.broadcast %20 : f32 to vector<8x128xf32>
    %22 = arith.mulf %1, %21 : vector<8x128xf32>
    %c3 = arith.constant 3 : index
    %23 = memref.load %arg1[%c3] : memref<68xf32, #tpu.memory_space<smem>>
    %24 = vector.broadcast %23 : f32 to vector<8x128xf32>
    %25 = arith.mulf %3, %24 : vector<8x128xf32>
    %26 = arith.addf %22, %25 : vector<8x128xf32>
    %27 = vector.broadcast %4 : f32 to vector<8x128xf32>
    %28 = arith.addf %26, %27 : vector<8x128xf32>
    %cst_7 = arith.constant 0.000000e+00 : f32
    %29 = vector.broadcast %cst_7 : f32 to vector<8x128xf32>
    %30 = arith.subf %29, %28 : vector<8x128xf32>
    %31 = math.exp %30 : vector<8x128xf32>
    %cst_8 = arith.constant 1.000000e+00 : f32
    %32 = vector.broadcast %cst_8 : f32 to vector<8x128xf32>
    %33 = arith.addf %32, %31 : vector<8x128xf32>
    %34 = tpu.reciprocal %33 {approx = true} : vector<8x128xf32> -> vector<8x128xf32>
    %c4 = arith.constant 4 : index
    %35 = memref.load %arg1[%c4] : memref<68xf32, #tpu.memory_space<smem>>
    %36 = vector.broadcast %35 : f32 to vector<8x128xf32>
    %37 = arith.mulf %1, %36 : vector<8x128xf32>
    %c5 = arith.constant 5 : index
    %38 = memref.load %arg1[%c5] : memref<68xf32, #tpu.memory_space<smem>>
    %39 = vector.broadcast %38 : f32 to vector<8x128xf32>
    %40 = arith.mulf %3, %39 : vector<8x128xf32>
    %41 = arith.addf %37, %40 : vector<8x128xf32>
    %42 = vector.broadcast %4 : f32 to vector<8x128xf32>
    %43 = arith.addf %41, %42 : vector<8x128xf32>
    %cst_9 = arith.constant 0.000000e+00 : f32
    %44 = vector.broadcast %cst_9 : f32 to vector<8x128xf32>
    %45 = arith.subf %44, %43 : vector<8x128xf32>
    %46 = math.exp %45 : vector<8x128xf32>
    %cst_10 = arith.constant 1.000000e+00 : f32
    %47 = vector.broadcast %cst_10 : f32 to vector<8x128xf32>
    %48 = arith.addf %47, %46 : vector<8x128xf32>
    %49 = tpu.reciprocal %48 {approx = true} : vector<8x128xf32> -> vector<8x128xf32>
    %c6 = arith.constant 6 : index
    %50 = memref.load %arg1[%c6] : memref<68xf32, #tpu.memory_space<smem>>
    %51 = vector.broadcast %50 : f32 to vector<8x128xf32>
    %52 = arith.mulf %1, %51 : vector<8x128xf32>
    %c7 = arith.constant 7 : index
    %53 = memref.load %arg1[%c7] : memref<68xf32, #tpu.memory_space<smem>>
    %54 = vector.broadcast %53 : f32 to vector<8x128xf32>
    %55 = arith.mulf %3, %54 : vector<8x128xf32>
    %56 = arith.addf %52, %55 : vector<8x128xf32>
    %57 = vector.broadcast %4 : f32 to vector<8x128xf32>
    %58 = arith.addf %56, %57 : vector<8x128xf32>
    %cst_11 = arith.constant 0.000000e+00 : f32
    %59 = vector.broadcast %cst_11 : f32 to vector<8x128xf32>
    %60 = arith.subf %59, %58 : vector<8x128xf32>
    %61 = math.exp %60 : vector<8x128xf32>
    %cst_12 = arith.constant 1.000000e+00 : f32
    %62 = vector.broadcast %cst_12 : f32 to vector<8x128xf32>
    %63 = arith.addf %62, %61 : vector<8x128xf32>
    %64 = tpu.reciprocal %63 {approx = true} : vector<8x128xf32> -> vector<8x128xf32>
    %c8 = arith.constant 8 : index
    %65 = memref.load %arg1[%c8] : memref<68xf32, #tpu.memory_space<smem>>
    %66 = vector.broadcast %65 : f32 to vector<8x128xf32>
    %67 = arith.mulf %1, %66 : vector<8x128xf32>
    %c9 = arith.constant 9 : index
    %68 = memref.load %arg1[%c9] : memref<68xf32, #tpu.memory_space<smem>>
    %69 = vector.broadcast %68 : f32 to vector<8x128xf32>
    %70 = arith.mulf %3, %69 : vector<8x128xf32>
    %71 = arith.addf %67, %70 : vector<8x128xf32>
    %72 = vector.broadcast %4 : f32 to vector<8x128xf32>
    %73 = arith.addf %71, %72 : vector<8x128xf32>
    %cst_13 = arith.constant 0.000000e+00 : f32
    %74 = vector.broadcast %cst_13 : f32 to vector<8x128xf32>
    %75 = arith.subf %74, %73 : vector<8x128xf32>
    %76 = math.exp %75 : vector<8x128xf32>
    %cst_14 = arith.constant 1.000000e+00 : f32
    %77 = vector.broadcast %cst_14 : f32 to vector<8x128xf32>
    %78 = arith.addf %77, %76 : vector<8x128xf32>
    %79 = tpu.reciprocal %78 {approx = true} : vector<8x128xf32> -> vector<8x128xf32>
    %c51 = arith.constant 51 : index
    %80 = memref.load %arg1[%c51] : memref<68xf32, #tpu.memory_space<smem>>
    %c11 = arith.constant 11 : index
    %81 = memref.load %arg1[%c11] : memref<68xf32, #tpu.memory_space<smem>>
    %82 = vector.broadcast %81 : f32 to vector<8x128xf32>
    %83 = arith.mulf %19, %82 : vector<8x128xf32>
    %84 = vector.broadcast %80 : f32 to vector<8x128xf32>
    %85 = arith.addf %84, %83 : vector<8x128xf32>
    %c12 = arith.constant 12 : index
    %86 = memref.load %arg1[%c12] : memref<68xf32, #tpu.memory_space<smem>>
    %87 = vector.broadcast %86 : f32 to vector<8x128xf32>
    %88 = arith.mulf %34, %87 : vector<8x128xf32>
    %89 = arith.addf %85, %88 : vector<8x128xf32>
    %c13 = arith.constant 13 : index
    %90 = memref.load %arg1[%c13] : memref<68xf32, #tpu.memory_space<smem>>
    %91 = vector.broadcast %90 : f32 to vector<8x128xf32>
    %92 = arith.mulf %49, %91 : vector<8x128xf32>
    %93 = arith.addf %89, %92 : vector<8x128xf32>
    %c14 = arith.constant 14 : index
    %94 = memref.load %arg1[%c14] : memref<68xf32, #tpu.memory_space<smem>>
    %95 = vector.broadcast %94 : f32 to vector<8x128xf32>
    %96 = arith.mulf %64, %95 : vector<8x128xf32>
    %97 = arith.addf %93, %96 : vector<8x128xf32>
    %c15 = arith.constant 15 : index
    %98 = memref.load %arg1[%c15] : memref<68xf32, #tpu.memory_space<smem>>
    %99 = vector.broadcast %98 : f32 to vector<8x128xf32>
    %100 = arith.mulf %79, %99 : vector<8x128xf32>
    %101 = arith.addf %97, %100 : vector<8x128xf32>
    %cst_15 = arith.constant 0.000000e+00 : f32
    %102 = vector.broadcast %cst_15 : f32 to vector<8x128xf32>
    %103 = arith.subf %102, %101 : vector<8x128xf32>
    %104 = math.exp %103 : vector<8x128xf32>
    %cst_16 = arith.constant 1.000000e+00 : f32
    %105 = vector.broadcast %cst_16 : f32 to vector<8x128xf32>
    %106 = arith.addf %105, %104 : vector<8x128xf32>
    %107 = tpu.reciprocal %106 {approx = true} : vector<8x128xf32> -> vector<8x128xf32>
    %c52 = arith.constant 52 : index
    %108 = memref.load %arg1[%c52] : memref<68xf32, #tpu.memory_space<smem>>
    %c16 = arith.constant 16 : index
    %109 = memref.load %arg1[%c16] : memref<68xf32, #tpu.memory_space<smem>>
    %110 = vector.broadcast %109 : f32 to vector<8x128xf32>
    %111 = arith.mulf %19, %110 : vector<8x128xf32>
    %112 = vector.broadcast %108 : f32 to vector<8x128xf32>
    %113 = arith.addf %112, %111 : vector<8x128xf32>
    %c17 = arith.constant 17 : index
    %114 = memref.load %arg1[%c17] : memref<68xf32, #tpu.memory_space<smem>>
    %115 = vector.broadcast %114 : f32 to vector<8x128xf32>
    %116 = arith.mulf %34, %115 : vector<8x128xf32>
    %117 = arith.addf %113, %116 : vector<8x128xf32>
    %c18 = arith.constant 18 : index
    %118 = memref.load %arg1[%c18] : memref<68xf32, #tpu.memory_space<smem>>
    %119 = vector.broadcast %118 : f32 to vector<8x128xf32>
    %120 = arith.mulf %49, %119 : vector<8x128xf32>
    %121 = arith.addf %117, %120 : vector<8x128xf32>
    %c19 = arith.constant 19 : index
    %122 = memref.load %arg1[%c19] : memref<68xf32, #tpu.memory_space<smem>>
    %123 = vector.broadcast %122 : f32 to vector<8x128xf32>
    %124 = arith.mulf %64, %123 : vector<8x128xf32>
    %125 = arith.addf %121, %124 : vector<8x128xf32>
    %c20 = arith.constant 20 : index
    %126 = memref.load %arg1[%c20] : memref<68xf32, #tpu.memory_space<smem>>
    %127 = vector.broadcast %126 : f32 to vector<8x128xf32>
    %128 = arith.mulf %79, %127 : vector<8x128xf32>
    %129 = arith.addf %125, %128 : vector<8x128xf32>
    %cst_17 = arith.constant 0.000000e+00 : f32
    %130 = vector.broadcast %cst_17 : f32 to vector<8x128xf32>
    %131 = arith.subf %130, %129 : vector<8x128xf32>
    %132 = math.exp %131 : vector<8x128xf32>
    %cst_18 = arith.constant 1.000000e+00 : f32
    %133 = vector.broadcast %cst_18 : f32 to vector<8x128xf32>
    %134 = arith.addf %133, %132 : vector<8x128xf32>
    %135 = tpu.reciprocal %134 {approx = true} : vector<8x128xf32> -> vector<8x128xf32>
    %c53 = arith.constant 53 : index
    %136 = memref.load %arg1[%c53] : memref<68xf32, #tpu.memory_space<smem>>
    %c21 = arith.constant 21 : index
    %137 = memref.load %arg1[%c21] : memref<68xf32, #tpu.memory_space<smem>>
    %138 = vector.broadcast %137 : f32 to vector<8x128xf32>
    %139 = arith.mulf %19, %138 : vector<8x128xf32>
    %140 = vector.broadcast %136 : f32 to vector<8x128xf32>
    %141 = arith.addf %140, %139 : vector<8x128xf32>
    %c22 = arith.constant 22 : index
    %142 = memref.load %arg1[%c22] : memref<68xf32, #tpu.memory_space<smem>>
    %143 = vector.broadcast %142 : f32 to vector<8x128xf32>
    %144 = arith.mulf %34, %143 : vector<8x128xf32>
    %145 = arith.addf %141, %144 : vector<8x128xf32>
    %c23 = arith.constant 23 : index
    %146 = memref.load %arg1[%c23] : memref<68xf32, #tpu.memory_space<smem>>
    %147 = vector.broadcast %146 : f32 to vector<8x128xf32>
    %148 = arith.mulf %49, %147 : vector<8x128xf32>
    %149 = arith.addf %145, %148 : vector<8x128xf32>
    %c24 = arith.constant 24 : index
    %150 = memref.load %arg1[%c24] : memref<68xf32, #tpu.memory_space<smem>>
    %151 = vector.broadcast %150 : f32 to vector<8x128xf32>
    %152 = arith.mulf %64, %151 : vector<8x128xf32>
    %153 = arith.addf %149, %152 : vector<8x128xf32>
    %c25 = arith.constant 25 : index
    %154 = memref.load %arg1[%c25] : memref<68xf32, #tpu.memory_space<smem>>
    %155 = vector.broadcast %154 : f32 to vector<8x128xf32>
    %156 = arith.mulf %79, %155 : vector<8x128xf32>
    %157 = arith.addf %153, %156 : vector<8x128xf32>
    %cst_19 = arith.constant 0.000000e+00 : f32
    %158 = vector.broadcast %cst_19 : f32 to vector<8x128xf32>
    %159 = arith.subf %158, %157 : vector<8x128xf32>
    %160 = math.exp %159 : vector<8x128xf32>
    %cst_20 = arith.constant 1.000000e+00 : f32
    %161 = vector.broadcast %cst_20 : f32 to vector<8x128xf32>
    %162 = arith.addf %161, %160 : vector<8x128xf32>
    %163 = tpu.reciprocal %162 {approx = true} : vector<8x128xf32> -> vector<8x128xf32>
    %c54 = arith.constant 54 : index
    %164 = memref.load %arg1[%c54] : memref<68xf32, #tpu.memory_space<smem>>
    %c26 = arith.constant 26 : index
    %165 = memref.load %arg1[%c26] : memref<68xf32, #tpu.memory_space<smem>>
    %166 = vector.broadcast %165 : f32 to vector<8x128xf32>
    %167 = arith.mulf %19, %166 : vector<8x128xf32>
    %168 = vector.broadcast %164 : f32 to vector<8x128xf32>
    %169 = arith.addf %168, %167 : vector<8x128xf32>
    %c27 = arith.constant 27 : index
    %170 = memref.load %arg1[%c27] : memref<68xf32, #tpu.memory_space<smem>>
    %171 = vector.broadcast %170 : f32 to vector<8x128xf32>
    %172 = arith.mulf %34, %171 : vector<8x128xf32>
    %173 = arith.addf %169, %172 : vector<8x128xf32>
    %c28 = arith.constant 28 : index
    %174 = memref.load %arg1[%c28] : memref<68xf32, #tpu.memory_space<smem>>
    %175 = vector.broadcast %174 : f32 to vector<8x128xf32>
    %176 = arith.mulf %49, %175 : vector<8x128xf32>
    %177 = arith.addf %173, %176 : vector<8x128xf32>
    %c29 = arith.constant 29 : index
    %178 = memref.load %arg1[%c29] : memref<68xf32, #tpu.memory_space<smem>>
    %179 = vector.broadcast %178 : f32 to vector<8x128xf32>
    %180 = arith.mulf %64, %179 : vector<8x128xf32>
    %181 = arith.addf %177, %180 : vector<8x128xf32>
    %c30 = arith.constant 30 : index
    %182 = memref.load %arg1[%c30] : memref<68xf32, #tpu.memory_space<smem>>
    %183 = vector.broadcast %182 : f32 to vector<8x128xf32>
    %184 = arith.mulf %79, %183 : vector<8x128xf32>
    %185 = arith.addf %181, %184 : vector<8x128xf32>
    %cst_21 = arith.constant 0.000000e+00 : f32
    %186 = vector.broadcast %cst_21 : f32 to vector<8x128xf32>
    %187 = arith.subf %186, %185 : vector<8x128xf32>
    %188 = math.exp %187 : vector<8x128xf32>
    %cst_22 = arith.constant 1.000000e+00 : f32
    %189 = vector.broadcast %cst_22 : f32 to vector<8x128xf32>
    %190 = arith.addf %189, %188 : vector<8x128xf32>
    %191 = tpu.reciprocal %190 {approx = true} : vector<8x128xf32> -> vector<8x128xf32>
    %c55 = arith.constant 55 : index
    %192 = memref.load %arg1[%c55] : memref<68xf32, #tpu.memory_space<smem>>
    %c31 = arith.constant 31 : index
    %193 = memref.load %arg1[%c31] : memref<68xf32, #tpu.memory_space<smem>>
    %194 = vector.broadcast %193 : f32 to vector<8x128xf32>
    %195 = arith.mulf %19, %194 : vector<8x128xf32>
    %196 = vector.broadcast %192 : f32 to vector<8x128xf32>
    %197 = arith.addf %196, %195 : vector<8x128xf32>
    %c32 = arith.constant 32 : index
    %198 = memref.load %arg1[%c32] : memref<68xf32, #tpu.memory_space<smem>>
    %199 = vector.broadcast %198 : f32 to vector<8x128xf32>
    %200 = arith.mulf %34, %199 : vector<8x128xf32>
    %201 = arith.addf %197, %200 : vector<8x128xf32>
    %c33 = arith.constant 33 : index
    %202 = memref.load %arg1[%c33] : memref<68xf32, #tpu.memory_space<smem>>
    %203 = vector.broadcast %202 : f32 to vector<8x128xf32>
    %204 = arith.mulf %49, %203 : vector<8x128xf32>
    %205 = arith.addf %201, %204 : vector<8x128xf32>
    %c34 = arith.constant 34 : index
    %206 = memref.load %arg1[%c34] : memref<68xf32, #tpu.memory_space<smem>>
    %207 = vector.broadcast %206 : f32 to vector<8x128xf32>
    %208 = arith.mulf %64, %207 : vector<8x128xf32>
    %209 = arith.addf %205, %208 : vector<8x128xf32>
    %c35 = arith.constant 35 : index
    %210 = memref.load %arg1[%c35] : memref<68xf32, #tpu.memory_space<smem>>
    %211 = vector.broadcast %210 : f32 to vector<8x128xf32>
    %212 = arith.mulf %79, %211 : vector<8x128xf32>
    %213 = arith.addf %209, %212 : vector<8x128xf32>
    %cst_23 = arith.constant 0.000000e+00 : f32
    %214 = vector.broadcast %cst_23 : f32 to vector<8x128xf32>
    %215 = arith.subf %214, %213 : vector<8x128xf32>
    %216 = math.exp %215 : vector<8x128xf32>
    %cst_24 = arith.constant 1.000000e+00 : f32
    %217 = vector.broadcast %cst_24 : f32 to vector<8x128xf32>
    %218 = arith.addf %217, %216 : vector<8x128xf32>
    %219 = tpu.reciprocal %218 {approx = true} : vector<8x128xf32> -> vector<8x128xf32>
    %c56 = arith.constant 56 : index
    %220 = memref.load %arg1[%c56] : memref<68xf32, #tpu.memory_space<smem>>
    %c36 = arith.constant 36 : index
    %221 = memref.load %arg1[%c36] : memref<68xf32, #tpu.memory_space<smem>>
    %222 = vector.broadcast %221 : f32 to vector<8x128xf32>
    %223 = arith.mulf %19, %222 : vector<8x128xf32>
    %224 = vector.broadcast %220 : f32 to vector<8x128xf32>
    %225 = arith.addf %224, %223 : vector<8x128xf32>
    %c37 = arith.constant 37 : index
    %226 = memref.load %arg1[%c37] : memref<68xf32, #tpu.memory_space<smem>>
    %227 = vector.broadcast %226 : f32 to vector<8x128xf32>
    %228 = arith.mulf %34, %227 : vector<8x128xf32>
    %229 = arith.addf %225, %228 : vector<8x128xf32>
    %c38 = arith.constant 38 : index
    %230 = memref.load %arg1[%c38] : memref<68xf32, #tpu.memory_space<smem>>
    %231 = vector.broadcast %230 : f32 to vector<8x128xf32>
    %232 = arith.mulf %49, %231 : vector<8x128xf32>
    %233 = arith.addf %229, %232 : vector<8x128xf32>
    %c39 = arith.constant 39 : index
    %234 = memref.load %arg1[%c39] : memref<68xf32, #tpu.memory_space<smem>>
    %235 = vector.broadcast %234 : f32 to vector<8x128xf32>
    %236 = arith.mulf %64, %235 : vector<8x128xf32>
    %237 = arith.addf %233, %236 : vector<8x128xf32>
    %c40 = arith.constant 40 : index
    %238 = memref.load %arg1[%c40] : memref<68xf32, #tpu.memory_space<smem>>
    %239 = vector.broadcast %238 : f32 to vector<8x128xf32>
    %240 = arith.mulf %79, %239 : vector<8x128xf32>
    %241 = arith.addf %237, %240 : vector<8x128xf32>
    %cst_25 = arith.constant 0.000000e+00 : f32
    %242 = vector.broadcast %cst_25 : f32 to vector<8x128xf32>
    %243 = arith.subf %242, %241 : vector<8x128xf32>
    %244 = math.exp %243 : vector<8x128xf32>
    %cst_26 = arith.constant 1.000000e+00 : f32
    %245 = vector.broadcast %cst_26 : f32 to vector<8x128xf32>
    %246 = arith.addf %245, %244 : vector<8x128xf32>
    %247 = tpu.reciprocal %246 {approx = true} : vector<8x128xf32> -> vector<8x128xf32>
    %c57 = arith.constant 57 : index
    %248 = memref.load %arg1[%c57] : memref<68xf32, #tpu.memory_space<smem>>
    %c41 = arith.constant 41 : index
    %249 = memref.load %arg1[%c41] : memref<68xf32, #tpu.memory_space<smem>>
    %250 = vector.broadcast %249 : f32 to vector<8x128xf32>
    %251 = arith.mulf %19, %250 : vector<8x128xf32>
    %252 = vector.broadcast %248 : f32 to vector<8x128xf32>
    %253 = arith.addf %252, %251 : vector<8x128xf32>
    %c42 = arith.constant 42 : index
    %254 = memref.load %arg1[%c42] : memref<68xf32, #tpu.memory_space<smem>>
    %255 = vector.broadcast %254 : f32 to vector<8x128xf32>
    %256 = arith.mulf %34, %255 : vector<8x128xf32>
    %257 = arith.addf %253, %256 : vector<8x128xf32>
    %c43 = arith.constant 43 : index
    %258 = memref.load %arg1[%c43] : memref<68xf32, #tpu.memory_space<smem>>
    %259 = vector.broadcast %258 : f32 to vector<8x128xf32>
    %260 = arith.mulf %49, %259 : vector<8x128xf32>
    %261 = arith.addf %257, %260 : vector<8x128xf32>
    %c44 = arith.constant 44 : index
    %262 = memref.load %arg1[%c44] : memref<68xf32, #tpu.memory_space<smem>>
    %263 = vector.broadcast %262 : f32 to vector<8x128xf32>
    %264 = arith.mulf %64, %263 : vector<8x128xf32>
    %265 = arith.addf %261, %264 : vector<8x128xf32>
    %c45 = arith.constant 45 : index
    %266 = memref.load %arg1[%c45] : memref<68xf32, #tpu.memory_space<smem>>
    %267 = vector.broadcast %266 : f32 to vector<8x128xf32>
    %268 = arith.mulf %79, %267 : vector<8x128xf32>
    %269 = arith.addf %265, %268 : vector<8x128xf32>
    %cst_27 = arith.constant 0.000000e+00 : f32
    %270 = vector.broadcast %cst_27 : f32 to vector<8x128xf32>
    %271 = arith.subf %270, %269 : vector<8x128xf32>
    %272 = math.exp %271 : vector<8x128xf32>
    %cst_28 = arith.constant 1.000000e+00 : f32
    %273 = vector.broadcast %cst_28 : f32 to vector<8x128xf32>
    %274 = arith.addf %273, %272 : vector<8x128xf32>
    %275 = tpu.reciprocal %274 {approx = true} : vector<8x128xf32> -> vector<8x128xf32>
    %c58 = arith.constant 58 : index
    %276 = memref.load %arg1[%c58] : memref<68xf32, #tpu.memory_space<smem>>
    %c46 = arith.constant 46 : index
    %277 = memref.load %arg1[%c46] : memref<68xf32, #tpu.memory_space<smem>>
    %278 = vector.broadcast %277 : f32 to vector<8x128xf32>
    %279 = arith.mulf %19, %278 : vector<8x128xf32>
    %280 = vector.broadcast %276 : f32 to vector<8x128xf32>
    %281 = arith.addf %280, %279 : vector<8x128xf32>
    %c47 = arith.constant 47 : index
    %282 = memref.load %arg1[%c47] : memref<68xf32, #tpu.memory_space<smem>>
    %283 = vector.broadcast %282 : f32 to vector<8x128xf32>
    %284 = arith.mulf %34, %283 : vector<8x128xf32>
    %285 = arith.addf %281, %284 : vector<8x128xf32>
    %c48 = arith.constant 48 : index
    %286 = memref.load %arg1[%c48] : memref<68xf32, #tpu.memory_space<smem>>
    %287 = vector.broadcast %286 : f32 to vector<8x128xf32>
    %288 = arith.mulf %49, %287 : vector<8x128xf32>
    %289 = arith.addf %285, %288 : vector<8x128xf32>
    %c49 = arith.constant 49 : index
    %290 = memref.load %arg1[%c49] : memref<68xf32, #tpu.memory_space<smem>>
    %291 = vector.broadcast %290 : f32 to vector<8x128xf32>
    %292 = arith.mulf %64, %291 : vector<8x128xf32>
    %293 = arith.addf %289, %292 : vector<8x128xf32>
    %c50 = arith.constant 50 : index
    %294 = memref.load %arg1[%c50] : memref<68xf32, #tpu.memory_space<smem>>
    %295 = vector.broadcast %294 : f32 to vector<8x128xf32>
    %296 = arith.mulf %79, %295 : vector<8x128xf32>
    %297 = arith.addf %293, %296 : vector<8x128xf32>
    %cst_29 = arith.constant 0.000000e+00 : f32
    %298 = vector.broadcast %cst_29 : f32 to vector<8x128xf32>
    %299 = arith.subf %298, %297 : vector<8x128xf32>
    %300 = math.exp %299 : vector<8x128xf32>
    %cst_30 = arith.constant 1.000000e+00 : f32
    %301 = vector.broadcast %cst_30 : f32 to vector<8x128xf32>
    %302 = arith.addf %301, %300 : vector<8x128xf32>
    %303 = tpu.reciprocal %302 {approx = true} : vector<8x128xf32> -> vector<8x128xf32>
    %c67 = arith.constant 67 : index
    %304 = memref.load %arg1[%c67] : memref<68xf32, #tpu.memory_space<smem>>
    %c59 = arith.constant 59 : index
    %305 = memref.load %arg1[%c59] : memref<68xf32, #tpu.memory_space<smem>>
    %306 = vector.broadcast %305 : f32 to vector<8x128xf32>
    %307 = arith.mulf %107, %306 : vector<8x128xf32>
    %308 = vector.broadcast %304 : f32 to vector<8x128xf32>
    %309 = arith.addf %308, %307 : vector<8x128xf32>
    %c60 = arith.constant 60 : index
    %310 = memref.load %arg1[%c60] : memref<68xf32, #tpu.memory_space<smem>>
    %311 = vector.broadcast %310 : f32 to vector<8x128xf32>
    %312 = arith.mulf %135, %311 : vector<8x128xf32>
    %313 = arith.addf %309, %312 : vector<8x128xf32>
    %c61 = arith.constant 61 : index
    %314 = memref.load %arg1[%c61] : memref<68xf32, #tpu.memory_space<smem>>
    %315 = vector.broadcast %314 : f32 to vector<8x128xf32>
    %316 = arith.mulf %163, %315 : vector<8x128xf32>
    %317 = arith.addf %313, %316 : vector<8x128xf32>
    %c62 = arith.constant 62 : index
    %318 = memref.load %arg1[%c62] : memref<68xf32, #tpu.memory_space<smem>>
    %319 = vector.broadcast %318 : f32 to vector<8x128xf32>
    %320 = arith.mulf %191, %319 : vector<8x128xf32>
    %321 = arith.addf %317, %320 : vector<8x128xf32>
    %c63 = arith.constant 63 : index
    %322 = memref.load %arg1[%c63] : memref<68xf32, #tpu.memory_space<smem>>
    %323 = vector.broadcast %322 : f32 to vector<8x128xf32>
    %324 = arith.mulf %219, %323 : vector<8x128xf32>
    %325 = arith.addf %321, %324 : vector<8x128xf32>
    %c64 = arith.constant 64 : index
    %326 = memref.load %arg1[%c64] : memref<68xf32, #tpu.memory_space<smem>>
    %327 = vector.broadcast %326 : f32 to vector<8x128xf32>
    %328 = arith.mulf %247, %327 : vector<8x128xf32>
    %329 = arith.addf %325, %328 : vector<8x128xf32>
    %c65 = arith.constant 65 : index
    %330 = memref.load %arg1[%c65] : memref<68xf32, #tpu.memory_space<smem>>
    %331 = vector.broadcast %330 : f32 to vector<8x128xf32>
    %332 = arith.mulf %275, %331 : vector<8x128xf32>
    %333 = arith.addf %329, %332 : vector<8x128xf32>
    %c66 = arith.constant 66 : index
    %334 = memref.load %arg1[%c66] : memref<68xf32, #tpu.memory_space<smem>>
    %335 = vector.broadcast %334 : f32 to vector<8x128xf32>
    %336 = arith.mulf %303, %335 : vector<8x128xf32>
    %337 = arith.addf %333, %336 : vector<8x128xf32>
    %cst_31 = arith.constant 0.000000e+00 : f32
    %338 = vector.broadcast %cst_31 : f32 to vector<8x128xf32>
    %339 = arith.maximumf %337, %338 : vector<8x128xf32>
    %c0_32 = arith.constant 0 : index
    %c0_33 = arith.constant 0 : index
    %340 = vector.load %arg3[%c0_32, %c0_33] : memref<8x128xf32, #tpu.memory_space<vmem>>, vector<8x128xf32>
    tpu.vector_store %arg3[%c0_32, %c0_33], %339 {strides = array<i32>} : memref<8x128xf32, #tpu.memory_space<vmem>>, vector<8x128xf32>,
    return
  }
  func.func @transform_0(%arg0: i32, %arg1: memref<68xf32, #tpu.memory_space<smem>>) -> (i32, i32, i32) {
    %c0_i32 = arith.constant 0 : i32
    %c0_i32_0 = arith.constant 0 : i32
    %c0_i32_1 = arith.constant 0 : i32
    return %c0_i32, %arg0, %c0_i32_0 : i32, i32, i32
  }
  func.func @transform_1(%arg0: i32, %arg1: memref<68xf32, #tpu.memory_space<smem>>) -> (i32, i32) {
    %c0_i32 = arith.constant 0 : i32
    %c0_i32_0 = arith.constant 0 : i32
    return %arg0, %c0_i32 : i32, i32
  }
}

</mosaic_0001>

<llo_original>
// kernel: tpu_custom_call.1
$region0: #{tpu_custom_call.1}
  #allocation0 [shape = 'u32[]', space=smem, size = 0x4, offset = 0x4, fixed_abs, tag = 'smem constant byte address 0x4 - core index']
  #allocation1 [shape = 'u32[72,128]{1,0:T(1,128)}', space=vmem, size = 0x9000, scoped, tag = 'internal scratch']
  #allocation2 [shape = 's32[1]{0}', space=sflag, size = 0x4, scoped, tag = 'scoped memory for tpu_custom_call.1']
  #allocation3 [shape = 'u8[512]{0}', space=smem, size = 0x200, scoped, tag = 'prefetched SMEM operand 0']
  %s0 = inlined_call_operand.hbm [shape: f32[68], index: 0, kind: input, shape index: {}]
  %s1 = inlined_call_operand.hbm [shape: f32[2,8,128], index: 1, kind: input, shape index: {}]
  %s2 = inlined_call_operand.hbm [shape: f32[8,128], index: 2, kind: output, shape index: {}]
  %s3 = sld [smem:[#allocation0]]
  $region18: #{tpu_custom_call.1} parent=0
    _
  %s5 = ssub.s32 1, %s3
  %s6 = scalar_select 0, %s5, %s3
  %s8 = sshll.u32 %s0, 4
  %s9 = int_to_ptr.hbm [resolvable:$true] %s8
  %11 = dma.hbm_to_smem %s9, 16, [#allocation3], [#allocation2]
  %13 = dma.done [#allocation2], 16
  %14 = sfence
  $region1: #{tpu_custom_call.1} parent=0
    #allocation4 [shape = 'u8[8192]{0}', space=vmem, size = 0x2000, scoped, tag = 'input window, operand 1, single buffered']
    #allocation5 [shape = 's32[1]{0}', space=sflag, size = 0x4, scoped, tag = 'scoped memory for tpu_custom_call.1']
    #allocation6 [shape = 's32[1]{0}', space=sflag, size = 0x4, scoped, tag = 'scoped memory for tpu_custom_call.1']
    #allocation7 [shape = 'u8[4096]{0}', space=vmem, size = 0x1000, scoped, tag = 'output window, operand 0, single buffered']
    %15 = vsyncpa [#allocation5], 0
    %16 = vsyncpa [#allocation6], 0
    // Predicated region
    $region2: #{tpu_custom_call.1} parent=1 // pred_check
      _
    $region3: #{tpu_custom_call.1} parent=1 // pred_check_branch
      %18 = sbr.rel (0) target = $region5
    $region4: #{tpu_custom_call.1} parent=1 // pred_region
      %20 = vsyncadd [#allocation5], 0
      %s21 = sshll.u32 %s1, 4
      %s22 = int_to_ptr.hbm [resolvable:$true] %s21
      %s23 = sshll.u32 [#allocation4], 4
      %s24 = int_to_ptr.vmem [resolvable:$true] %s23
      %29 = dma.hbm_to_vmem [thread:$0]  %s22, 256, %s24, [#allocation5], 128, 128, 8
    $region5: #{tpu_custom_call.1} parent=1 // pred_fallthru
      _
    // Predicated region
    $region6: #{tpu_custom_call.1} parent=1 // pred_check
      _
    $region7: #{tpu_custom_call.1} parent=1 // pred_check_branch
      %31 = sbr.rel (0) target = $region9
    $region8: #{tpu_custom_call.1} parent=1 // pred_region
      %33 = dma.done [#allocation5], 256
    $region9: #{tpu_custom_call.1} parent=1 // pred_fallthru
      _
    %v34 = vld [vmem:[#allocation4] sm:$0xff]
    %s35 = scalar_lea.vmem [#allocation4], 8
    %v36 = vld [vmem:[%s35] sm:$0xff]
    %s37 = sld [smem:[#allocation3 + $0xa]]
    %s38 = sld [smem:[#allocation3]]
    %v39 = vstv %s38
    %v40 = vmul.f32 %v34, %v39
    %s41 = sld [smem:[#allocation3 + $0x1]]
    %v42 = vstv %s41
    %v43 = vmul.f32 %v36, %v42
    %v44 = vadd.f32 %v40, %v43
    %v45 = vstv %s37
    %v46 = vadd.f32 %v44, %v45
    %v47 = vsub.f32 0.0, %v46
    %v48 = vmul.f32 %v47, 1.442695
    %v49 = vpow.pop %v48
    %v50 = vadd.f32 %v49, 1.0
    %v51 = vrcp.pop %v50
    %s52 = sld [smem:[#allocation3 + $0x2]]
    %v53 = vstv %s52
    %v54 = vmul.f32 %v34, %v53
    %s55 = sld [smem:[#allocation3 + $0x3]]
    %v56 = vstv %s55
    %v57 = vmul.f32 %v36, %v56
    %v58 = vadd.f32 %v54, %v57
    %v59 = vadd.f32 %v58, %v45
    %v60 = vsub.f32 0.0, %v59
    %v61 = vmul.f32 %v60, 1.442695
    %v62 = vpow.pop %v61
    %v63 = vadd.f32 %v62, 1.0
    %v64 = vrcp.pop %v63
    %s65 = sld [smem:[#allocation3 + $0x4]]
    %v66 = vstv %s65
    %v67 = vmul.f32 %v34, %v66
    %s68 = sld [smem:[#allocation3 + $0x5]]
    %v69 = vstv %s68
    %v70 = vmul.f32 %v36, %v69
    %v71 = vadd.f32 %v67, %v70
    %v72 = vadd.f32 %v71, %v45
    %v73 = vsub.f32 0.0, %v72
    %v74 = vmul.f32 %v73, 1.442695
    %v75 = vpow.pop %v74
    %v76 = vadd.f32 %v75, 1.0
    %v77 = vrcp.pop %v76
    %s78 = sld [smem:[#allocation3 + $0x6]]
    %v79 = vstv %s78
    %v80 = vmul.f32 %v34, %v79
    %s81 = sld [smem:[#allocation3 + $0x7]]
    %v82 = vstv %s81
    %v83 = vmul.f32 %v36, %v82
    %v84 = vadd.f32 %v80, %v83
    %v85 = vadd.f32 %v84, %v45
    %v86 = vsub.f32 0.0, %v85
    %v87 = vmul.f32 %v86, 1.442695
    %v88 = vpow.pop %v87
    %v89 = vadd.f32 %v88, 1.0
    %v90 = vrcp.pop %v89
    %s91 = sld [smem:[#allocation3 + $0x8]]
    %v92 = vstv %s91
    %v93 = vmul.f32 %v34, %v92
    %s94 = sld [smem:[#allocation3 + $0x9]]
    %v95 = vstv %s94
    %v96 = vmul.f32 %v36, %v95
    %v97 = vadd.f32 %v93, %v96
    %v98 = vadd.f32 %v97, %v45
    %v99 = vsub.f32 0.0, %v98
    %v100 = vmul.f32 %v99, 1.442695
    %v101 = vpow.pop %v100
    %v102 = vadd.f32 %v101, 1.0
    %v103 = vrcp.pop %v102
    %s104 = sld [smem:[#allocation3 + $0x33]]
    %s105 = sld [smem:[#allocation3 + $0xb]]
    %v106 = vstv %s105
    %v107 = vmul.f32 %v51, %v106
    %v108 = vstv %s104
    %v109 = vadd.f32 %v108, %v107
    %s110 = sld [smem:[#allocation3 + $0xc]]
    %v111 = vstv %s110
    %v112 = vmul.f32 %v64, %v111
    %v113 = vadd.f32 %v109, %v112
    %s114 = sld [smem:[#allocation3 + $0xd]]
    %v115 = vstv %s114
    %v116 = vmul.f32 %v77, %v115
    %v117 = vadd.f32 %v113, %v116
    %s118 = sld [smem:[#allocation3 + $0xe]]
    %v119 = vstv %s118
    %v120 = vmul.f32 %v90, %v119
    %v121 = vadd.f32 %v117, %v120
    %s122 = sld [smem:[#allocation3 + $0xf]]
    %v123 = vstv %s122
    %v124 = vmul.f32 %v103, %v123
    %v125 = vadd.f32 %v121, %v124
    %v126 = vsub.f32 0.0, %v125
    %v127 = vmul.f32 %v126, 1.442695
    %v128 = vpow.pop %v127
    %v129 = vadd.f32 %v128, 1.0
    %v130 = vrcp.pop %v129
    %s131 = sld [smem:[#allocation3 + $0x34]]
    %s132 = sld [smem:[#allocation3 + $0x10]]
    %v133 = vstv %s132
    %v134 = vmul.f32 %v51, %v133
    %v135 = vstv %s131
    %v136 = vadd.f32 %v135, %v134
    %s137 = sld [smem:[#allocation3 + $0x11]]
    %v138 = vstv %s137
    %v139 = vmul.f32 %v64, %v138
    %v140 = vadd.f32 %v136, %v139
    %s141 = sld [smem:[#allocation3 + $0x12]]
    %v142 = vstv %s141
    %v143 = vmul.f32 %v77, %v142
    %v144 = vadd.f32 %v140, %v143
    %s145 = sld [smem:[#allocation3 + $0x13]]
    %v146 = vstv %s145
    %v147 = vmul.f32 %v90, %v146
    %v148 = vadd.f32 %v144, %v147
    %s149 = sld [smem:[#allocation3 + $0x14]]
    %v150 = vstv %s149
    %v151 = vmul.f32 %v103, %v150
    %v152 = vadd.f32 %v148, %v151
    %v153 = vsub.f32 0.0, %v152
    %v154 = vmul.f32 %v153, 1.442695
    %v155 = vpow.pop %v154
    %v156 = vadd.f32 %v155, 1.0
    %v157 = vrcp.pop %v156
    %s158 = sld [smem:[#allocation3 + $0x35]]
    %s159 = sld [smem:[#allocation3 + $0x15]]
    %v160 = vstv %s159
    %v161 = vmul.f32 %v51, %v160
    %v162 = vstv %s158
    %v163 = vadd.f32 %v162, %v161
    %s164 = sld [smem:[#allocation3 + $0x16]]
    %v165 = vstv %s164
    %v166 = vmul.f32 %v64, %v165
    %v167 = vadd.f32 %v163, %v166
    %s168 = sld [smem:[#allocation3 + $0x17]]
    %v169 = vstv %s168
    %v170 = vmul.f32 %v77, %v169
    %v171 = vadd.f32 %v167, %v170
    %s172 = sld [smem:[#allocation3 + $0x18]]
    %v173 = vstv %s172
    %v174 = vmul.f32 %v90, %v173
    %v175 = vadd.f32 %v171, %v174
    %s176 = sld [smem:[#allocation3 + $0x19]]
    %v177 = vstv %s176
    %v178 = vmul.f32 %v103, %v177
    %v179 = vadd.f32 %v175, %v178
    %v180 = vsub.f32 0.0, %v179
    %v181 = vmul.f32 %v180, 1.442695
    %v182 = vpow.pop %v181
    %v183 = vadd.f32 %v182, 1.0
    %v184 = vrcp.pop %v183
    %s185 = sld [smem:[#allocation3 + $0x36]]
    %s186 = sld [smem:[#allocation3 + $0x1a]]
    %v187 = vstv %s186
    %v188 = vmul.f32 %v51, %v187
    %v189 = vstv %s185
    %v190 = vadd.f32 %v189, %v188
    %s191 = sld [smem:[#allocation3 + $0x1b]]
    %v192 = vstv %s191
    %v193 = vmul.f32 %v64, %v192
    %v194 = vadd.f32 %v190, %v193
    %s195 = sld [smem:[#allocation3 + $0x1c]]
    %v196 = vstv %s195
    %v197 = vmul.f32 %v77, %v196
    %v198 = vadd.f32 %v194, %v197
    %s199 = sld [smem:[#allocation3 + $0x1d]]
    %v200 = vstv %s199
    %v201 = vmul.f32 %v90, %v200
    %v202 = vadd.f32 %v198, %v201
    %s203 = sld [smem:[#allocation3 + $0x1e]]
    %v204 = vstv %s203
    %v205 = vmul.f32 %v103, %v204
    %v206 = vadd.f32 %v202, %v205
    %v207 = vsub.f32 0.0, %v206
    %v208 = vmul.f32 %v207, 1.442695
    %v209 = vpow.pop %v208
    %v210 = vadd.f32 %v209, 1.0
    %v211 = vrcp.pop %v210
    %s212 = sld [smem:[#allocation3 + $0x37]]
    %s213 = sld [smem:[#allocation3 + $0x1f]]
    %v214 = vstv %s213
    %v215 = vmul.f32 %v51, %v214
    %v216 = vstv %s212
    %v217 = vadd.f32 %v216, %v215
    %s218 = sld [smem:[#allocation3 + $0x20]]
    %v219 = vstv %s218
    %v220 = vmul.f32 %v64, %v219
    %v221 = vadd.f32 %v217, %v220
    %s222 = sld [smem:[#allocation3 + $0x21]]
    %v223 = vstv %s222
    %v224 = vmul.f32 %v77, %v223
    %v225 = vadd.f32 %v221, %v224
    %s226 = sld [smem:[#allocation3 + $0x22]]
    %v227 = vstv %s226
    %v228 = vmul.f32 %v90, %v227
    %v229 = vadd.f32 %v225, %v228
    %s230 = sld [smem:[#allocation3 + $0x23]]
    %v231 = vstv %s230
    %v232 = vmul.f32 %v103, %v231
    %v233 = vadd.f32 %v229, %v232
    %v234 = vsub.f32 0.0, %v233
    %v235 = vmul.f32 %v234, 1.442695
    %v236 = vpow.pop %v235
    %v237 = vadd.f32 %v236, 1.0
    %v238 = vrcp.pop %v237
    %s239 = sld [smem:[#allocation3 + $0x38]]
    %s240 = sld [smem:[#allocation3 + $0x24]]
    %v241 = vstv %s240
    %v242 = vmul.f32 %v51, %v241
    %v243 = vstv %s239
    %v244 = vadd.f32 %v243, %v242
    %s245 = sld [smem:[#allocation3 + $0x25]]
    %v246 = vstv %s245
    %v247 = vmul.f32 %v64, %v246
    %v248 = vadd.f32 %v244, %v247
    %s249 = sld [smem:[#allocation3 + $0x26]]
    %v250 = vstv %s249
    %v251 = vmul.f32 %v77, %v250
    %v252 = vadd.f32 %v248, %v251
    %s253 = sld [smem:[#allocation3 + $0x27]]
    %v254 = vstv %s253
    %v255 = vmul.f32 %v90, %v254
    %v256 = vadd.f32 %v252, %v255
    %s257 = sld [smem:[#allocation3 + $0x28]]
    %v258 = vstv %s257
    %v259 = vmul.f32 %v103, %v258
    %v260 = vadd.f32 %v256, %v259
    %v261 = vsub.f32 0.0, %v260
    %v262 = vmul.f32 %v261, 1.442695
    %v263 = vpow.pop %v262
    %v264 = vadd.f32 %v263, 1.0
    %v265 = vrcp.pop %v264
    %s266 = sld [smem:[#allocation3 + $0x39]]
    %s267 = sld [smem:[#allocation3 + $0x29]]
    %v268 = vstv %s267
    %v269 = vmul.f32 %v51, %v268
    %v270 = vstv %s266
    %v271 = vadd.f32 %v270, %v269
    %s272 = sld [smem:[#allocation3 + $0x2a]]
    %v273 = vstv %s272
    %v274 = vmul.f32 %v64, %v273
    %v275 = vadd.f32 %v271, %v274
    %s276 = sld [smem:[#allocation3 + $0x2b]]
    %v277 = vstv %s276
    %v278 = vmul.f32 %v77, %v277
    %v279 = vadd.f32 %v275, %v278
    %s280 = sld [smem:[#allocation3 + $0x2c]]
    %v281 = vstv %s280
    %v282 = vmul.f32 %v90, %v281
    %v283 = vadd.f32 %v279, %v282
    %s284 = sld [smem:[#allocation3 + $0x2d]]
    %v285 = vstv %s284
    %v286 = vmul.f32 %v103, %v285
    %v287 = vadd.f32 %v283, %v286
    %v288 = vsub.f32 0.0, %v287
    %v289 = vmul.f32 %v288, 1.442695
    %v290 = vpow.pop %v289
    %v291 = vadd.f32 %v290, 1.0
    %v292 = vrcp.pop %v291
    %s293 = sld [smem:[#allocation3 + $0x3a]]
    %s294 = sld [smem:[#allocation3 + $0x2e]]
    %v295 = vstv %s294
    %v296 = vmul.f32 %v51, %v295
    %v297 = vstv %s293
    %v298 = vadd.f32 %v297, %v296
    %s299 = sld [smem:[#allocation3 + $0x2f]]
    %v300 = vstv %s299
    %v301 = vmul.f32 %v64, %v300
    %v302 = vadd.f32 %v298, %v301
    %s303 = sld [smem:[#allocation3 + $0x30]]
    %v304 = vstv %s303
    %v305 = vmul.f32 %v77, %v304
    %v306 = vadd.f32 %v302, %v305
    %s307 = sld [smem:[#allocation3 + $0x31]]
    %v308 = vstv %s307
    %v309 = vmul.f32 %v90, %v308
    %v310 = vadd.f32 %v306, %v309
    %s311 = sld [smem:[#allocation3 + $0x32]]
    %v312 = vstv %s311
    %v313 = vmul.f32 %v103, %v312
    %v314 = vadd.f32 %v310, %v313
    %v315 = vsub.f32 0.0, %v314
    %v316 = vmul.f32 %v315, 1.442695
    %v317 = vpow.pop %v316
    %v318 = vadd.f32 %v317, 1.0
    %v319 = vrcp.pop %v318
    %s320 = sld [smem:[#allocation3 + $0x43]]
    %s321 = sld [smem:[#allocation3 + $0x3b]]
    %v322 = vstv %s321
    %v323 = vmul.f32 %v130, %v322
    %v324 = vstv %s320
    %v325 = vadd.f32 %v324, %v323
    %s326 = sld [smem:[#allocation3 + $0x3c]]
    %v327 = vstv %s326
    %v328 = vmul.f32 %v157, %v327
    %v329 = vadd.f32 %v325, %v328
    %s330 = sld [smem:[#allocation3 + $0x3d]]
    %v331 = vstv %s330
    %v332 = vmul.f32 %v184, %v331
    %v333 = vadd.f32 %v329, %v332
    %s334 = sld [smem:[#allocation3 + $0x3e]]
    %v335 = vstv %s334
    %v336 = vmul.f32 %v211, %v335
    %v337 = vadd.f32 %v333, %v336
    %s338 = sld [smem:[#allocation3 + $0x3f]]
    %v339 = vstv %s338
    %v340 = vmul.f32 %v238, %v339
    %v341 = vadd.f32 %v337, %v340
    %s342 = sld [smem:[#allocation3 + $0x40]]
    %v343 = vstv %s342
    %v344 = vmul.f32 %v265, %v343
    %v345 = vadd.f32 %v341, %v344
    %s346 = sld [smem:[#allocation3 + $0x41]]
    %v347 = vstv %s346
    %v348 = vmul.f32 %v292, %v347
    %v349 = vadd.f32 %v345, %v348
    %s350 = sld [smem:[#allocation3 + $0x42]]
    %v351 = vstv %s350
    %v352 = vmul.f32 %v319, %v351
    %v353 = vadd.f32 %v349, %v352
    %v354 = vmax.f32 %v353, 0.0
    %355 = vst [vmem:[#allocation7] sm:$0xff] %v354
    // Predicated region
    $region10: #{tpu_custom_call.1} parent=1 // pred_check
      _
    $region11: #{tpu_custom_call.1} parent=1 // pred_check_branch
      %357 = sbr.rel (0) target = $region13
    $region12: #{tpu_custom_call.1} parent=1 // pred_region
      %359 = vsyncadd [#allocation6], 0
      %s361 = sshll.u32 [#allocation7], 4
      %s362 = int_to_ptr.vmem [resolvable:$true] %s361
      %s363 = sshll.u32 %s2, 4
      %s364 = int_to_ptr.hbm [resolvable:$true] %s363
      %366 = dma.vmem_to_hbm [thread:$0]  %s362, 128, %s364, [#allocation6]
    $region13: #{tpu_custom_call.1} parent=1 // pred_fallthru
      _
    // Predicated region
    $region14: #{tpu_custom_call.1} parent=1 // pred_check
      _
    $region15: #{tpu_custom_call.1} parent=1 // pred_check_branch
      %368 = sbr.rel (0) target = $region17
    $region16: #{tpu_custom_call.1} parent=1 // pred_region
      %370 = dma.done [#allocation6], 128
    $region17: #{tpu_custom_call.1} parent=1 // pred_fallthru
      _
    %371 = vsyncpa [#allocation5], 1
    %372 = vsyncpa [#allocation6], 1

</llo_original>
